<compile_context>
chip_gen: v5e
topology: v5e:2x2
jax: 0.10.0
libtpu: 0.0.40
codegen_flags: <defaults>
</compile_context>

<pallas_src>
import functools

import jax
import jax.numpy as jnp
from jax.experimental import pallas as pl
from jax.experimental.pallas import tpu as pltpu


# ----------------------------- config ---------------------------------------
class DotDic(dict):
    __getattr__ = dict.__getitem__


CONFIG = DotDic(
    obs_size=32,
    fp_size=8,
    n_actions=4,
    comm_size=4,
    state_size=64,
)


def _round_up(x: int, m: int) -> int:
    return ((x + m - 1) // m) * m


# ----------------------------- kernel ---------------------------------------
def _mlp_head_kernel(x_ref, w1_ref, b1_ref, w2_ref, b2_ref, out_ref):
    # hidden = relu(x @ W1 + b1): bf16 operands, f32 MXU accumulation.
    h = jnp.dot(x_ref[...], w1_ref[...], preferred_element_type=jnp.float32)
    h = jnp.maximum(h + b1_ref[...], 0.0)            # bias add + ReLU in f32
    # out = hidden @ W2 + b2: re-cast activations to bf16 for the MXU,
    # accumulate in f32; output last dim is lane-dense (128), stored as bf16.
    o = jnp.dot(h.astype(w2_ref.dtype), w2_ref[...],
                preferred_element_type=jnp.float32)
    out_ref[...] = (o + b2_ref[...]).astype(out_ref.dtype)


@functools.partial(jax.jit, static_argnames=("tb",))
def mlp_head(x, w1, b1, w2, b2, *, tb=1024):
    """Fused 2-layer MLP forward, batch-tiled.

    x:  [batch, obs]        (bf16)
    w1: [obs, state]        (bf16)        b1: [1, state]    (f32)
    w2: [state, out_pad]    (bf16, lane-dense padded)
    b2: [1, out_pad]        (f32)
    returns [batch, out_pad] bf16 (caller slices the valid columns).
    """
    batch, obs = x.shape
    state = w1.shape[1]
    out_pad = w2.shape[1]

    # Batch tile: multiple of 8 sublanes, capped at 1024 rows (bf16 out block
    # 1024x128x2B x 2 bufs = 512 KiB; x block 1024x32x2B x 2 bufs = 128 KiB ->
    # comfortably under the 32 MiB scoped-VMEM default on every chip).
    tb = min(tb, _round_up(max(batch, 1), 8))
    padded = _round_up(batch, tb)
    if padded != batch:
        x = jnp.pad(x, ((0, padded - batch), (0, 0)))

    out = pl.pallas_call(
        _mlp_head_kernel,
        out_shape=jax.ShapeDtypeStruct((padded, out_pad), jnp.bfloat16),
        grid=(padded // tb,),
        in_specs=[
            # activation stream: tiled over the batch grid axis
            pl.BlockSpec((tb, obs), lambda i: (i, 0)),
            # weights / biases: constant index map -> stay VMEM-resident
            pl.BlockSpec((obs, state), lambda i: (0, 0)),
            pl.BlockSpec((1, state), lambda i: (0, 0)),
            pl.BlockSpec((state, out_pad), lambda i: (0, 0)),
            pl.BlockSpec((1, out_pad), lambda i: (0, 0)),
        ],
        out_specs=pl.BlockSpec((tb, out_pad), lambda i: (i, 0)),
        compiler_params=pltpu.CompilerParams(
            dimension_semantics=("parallel",)),   # v7x: shard batch over 2 TCs
    )(x, w1, b1, w2, b2)
    return out[:batch]


# ----------------------------- model ----------------------------------------
class PallasModel:
    def __init__(self, config: DotDic):
        self.obs_dim = config.obs_size
        self.fp_dim = config.fp_size
        self.action_dim = config.n_actions
        self.comm_dim = config.comm_size
        self.state_dim = config.state_size
        self.model_config = config

        self.out_dim = self.action_dim + self.comm_dim
        # Lane-dense output slab: pad columns to a multiple of 128.
        self.out_pad = max(128, _round_up(self.out_dim, 128))

        # Deterministic parameter init (synthetic; no checkpoint load).
        k = jax.random.PRNGKey(42)
        k1, k2 = jax.random.split(k)
        w1 = (jax.random.normal(k1, (self.obs_dim, self.state_dim),
                                jnp.float32) / jnp.sqrt(self.obs_dim))
        w2 = (jax.random.normal(k2, (self.state_dim, self.out_dim),
                                jnp.float32) / jnp.sqrt(self.state_dim))
        # bf16 weights (f32 MXU accumulation in-kernel), f32 biases.
        self.w1 = w1.astype(jnp.bfloat16)
        self.b1 = jnp.zeros((1, self.state_dim), jnp.float32)
        self.w2 = jnp.pad(
            w2, ((0, 0), (0, self.out_pad - self.out_dim))
        ).astype(jnp.bfloat16)
        self.b2 = jnp.zeros((1, self.out_pad), jnp.float32)

    def get_initial_state(self):
        return []

    def forward(self, input_obs, hidden_state, **kwargs):
        x = input_obs.astype(jnp.bfloat16)   # halves activation DMA bytes
        out = mlp_head(x, self.w1, self.b1, self.w2, self.b2)
        q_actions = out[:, : self.action_dim].astype(jnp.float32)
        comm = out[:, self.action_dim: self.action_dim
                   + self.comm_dim].astype(jnp.float32)
        return q_actions, comm, hidden_state


# ----------------------------- main ------------------------------------------
if __name__ == "__main__":
    model = PallasModel(CONFIG)

    key = jax.random.PRNGKey(0)
    batch = 2
    input_obs = jax.random.normal(key, (batch, CONFIG.obs_size), jnp.float32)
    hidden_state = model.get_initial_state()

    q, comm, hs = model.forward(input_obs, hidden_state)
    jax.block_until_ready((q, comm))

    # Cross-check against plain-JAX reference using the same bf16 params.
    x_bf = input_obs.astype(jnp.bfloat16)
    h_ref = jnp.maximum(
        jnp.dot(x_bf, model.w1, preferred_element_type=jnp.float32)
        + model.b1, 0.0)
    out_ref = (jnp.dot(h_ref.astype(jnp.bfloat16), model.w2,
                       preferred_element_type=jnp.float32) + model.b2)
    out_ref = out_ref[:, : model.out_dim]

    assert q.shape == (batch, CONFIG.n_actions)
    assert comm.shape == (batch, CONFIG.comm_size)
    assert hs == []
    assert jnp.allclose(jnp.concatenate([q, comm], axis=1), out_ref,
                        atol=1e-2, rtol=1e-2)
    print("KERNEL_OK")
</pallas_src>

<mosaic_0001>
module attributes {stable_mosaic.version = 11 : i64} {
  func.func @_mlp_head_kernel(%arg0: i32, %arg1: memref<8x32xbf16, #tpu.memory_space<vmem>>, %arg2: memref<32x64xbf16, #tpu.memory_space<vmem>>, %arg3: memref<1x64xf32, #tpu.memory_space<vmem>>, %arg4: memref<64x128xbf16, #tpu.memory_space<vmem>>, %arg5: memref<1x128xf32, #tpu.memory_space<vmem>>, %arg6: memref<8x128xbf16, #tpu.memory_space<vmem>>) attributes {dimension_semantics = [#tpu.dimension_semantics<parallel>], iteration_bounds = array<i64: 1>, scalar_prefetch = 0 : i64, scratch_operands = 0 : i64, tpu.core_type = #tpu.core_type<tc>, window_params = [{transform_indices = @transform_0, window_bounds = array<i64: 8, 32>}, {pipeline_mode = #tpu.pipeline_mode<synchronous>, transform_indices = @transform_1, window_bounds = array<i64: 32, 64>}, {pipeline_mode = #tpu.pipeline_mode<synchronous>, transform_indices = @transform_2, window_bounds = array<i64: 1, 64>}, {pipeline_mode = #tpu.pipeline_mode<synchronous>, transform_indices = @transform_3, window_bounds = array<i64: 64, 128>}, {pipeline_mode = #tpu.pipeline_mode<synchronous>, transform_indices = @transform_4, window_bounds = array<i64: 1, 128>}, {transform_indices = @transform_5, window_bounds = array<i64: 8, 128>}]} {
    %c0 = arith.constant 0 : index
    %c0_0 = arith.constant 0 : index
    %0 = vector.load %arg1[%c0, %c0_0] : memref<8x32xbf16, #tpu.memory_space<vmem>>, vector<8x32xbf16>
    %c0_1 = arith.constant 0 : index
    %c0_2 = arith.constant 0 : index
    %1 = vector.load %arg2[%c0_1, %c0_2] : memref<32x64xbf16, #tpu.memory_space<vmem>>, vector<32x64xbf16>
    %cst = arith.constant dense<0.000000e+00> : vector<8x64xf32>
    %2 = tpu.matmul %0, %1, %cst {dimension_numbers = #tpu.dot_dimension_numbers<[1], [0], [0], [1], [0, 0, 1, 1], [], []>} : vector<8x32xbf16>, vector<32x64xbf16>, vector<8x64xf32> -> vector<8x64xf32>
    %c0_3 = arith.constant 0 : index
    %c0_4 = arith.constant 0 : index
    %3 = vector.load %arg3[%c0_3, %c0_4] : memref<1x64xf32, #tpu.memory_space<vmem>>, vector<1x64xf32>
    %4 = vector.broadcast %3 : vector<1x64xf32> to vector<8x64xf32>
    %5 = arith.addf %2, %4 : vector<8x64xf32>
    %cst_5 = arith.constant 0.000000e+00 : f32
    %6 = vector.broadcast %cst_5 : f32 to vector<8x64xf32>
    %7 = arith.maximumf %5, %6 : vector<8x64xf32>
    %8 = arith.truncf %7 : vector<8x64xf32> to vector<8x64xbf16>
    %c0_6 = arith.constant 0 : index
    %c0_7 = arith.constant 0 : index
    %9 = vector.load %arg4[%c0_6, %c0_7] : memref<64x128xbf16, #tpu.memory_space<vmem>>, vector<64x128xbf16>
    %cst_8 = arith.constant dense<0.000000e+00> : vector<8x128xf32>
    %10 = tpu.matmul %8, %9, %cst_8 {dimension_numbers = #tpu.dot_dimension_numbers<[1], [0], [0], [1], [0, 0, 1, 1], [], []>} : vector<8x64xbf16>, vector<64x128xbf16>, vector<8x128xf32> -> vector<8x128xf32>
    %c0_9 = arith.constant 0 : index
    %c0_10 = arith.constant 0 : index
    %11 = vector.load %arg5[%c0_9, %c0_10] : memref<1x128xf32, #tpu.memory_space<vmem>>, vector<1x128xf32>
    %12 = vector.broadcast %11 : vector<1x128xf32> to vector<8x128xf32>
    %13 = arith.addf %10, %12 : vector<8x128xf32>
    %14 = arith.truncf %13 : vector<8x128xf32> to vector<8x128xbf16>
    %c0_11 = arith.constant 0 : index
    %c0_12 = arith.constant 0 : index
    %15 = vector.load %arg6[%c0_11, %c0_12] : memref<8x128xbf16, #tpu.memory_space<vmem>>, vector<8x128xbf16>
    tpu.vector_store %arg6[%c0_11, %c0_12], %14 {strides = array<i32>} : memref<8x128xbf16, #tpu.memory_space<vmem>>, vector<8x128xbf16>,
    return
  }
  func.func @transform_0(%arg0: i32) -> (i32, i32) {
    %c0_i32 = arith.constant 0 : i32
    %c0_i32_0 = arith.constant 0 : i32
    return %arg0, %c0_i32 : i32, i32
  }
  func.func @transform_1(%arg0: i32) -> (i32, i32) {
    %c0_i32 = arith.constant 0 : i32
    %c0_i32_0 = arith.constant 0 : i32
    %c0_i32_1 = arith.constant 0 : i32
    return %c0_i32, %c0_i32_0 : i32, i32
  }
  func.func @transform_2(%arg0: i32) -> (i32, i32) {
    %c0_i32 = arith.constant 0 : i32
    %c0_i32_0 = arith.constant 0 : i32
    %c0_i32_1 = arith.constant 0 : i32
    return %c0_i32, %c0_i32_0 : i32, i32
  }
  func.func @transform_3(%arg0: i32) -> (i32, i32) {
    %c0_i32 = arith.constant 0 : i32
    %c0_i32_0 = arith.constant 0 : i32
    %c0_i32_1 = arith.constant 0 : i32
    return %c0_i32, %c0_i32_0 : i32, i32
  }
  func.func @transform_4(%arg0: i32) -> (i32, i32) {
    %c0_i32 = arith.constant 0 : i32
    %c0_i32_0 = arith.constant 0 : i32
    %c0_i32_1 = arith.constant 0 : i32
    return %c0_i32, %c0_i32_0 : i32, i32
  }
  func.func @transform_5(%arg0: i32) -> (i32, i32) {
    %c0_i32 = arith.constant 0 : i32
    %c0_i32_0 = arith.constant 0 : i32
    return %arg0, %c0_i32 : i32, i32
  }
}

</mosaic_0001>

<llo_original>
// kernel: mlp_head.1
$region0: #{mlp_head.1}
  #allocation0 [shape = 'u32[]', space=smem, size = 0x4, offset = 0x4, fixed_abs, tag = 'smem constant byte address 0x4 - core index']
  #allocation1 [shape = 'u32[72,128]{1,0:T(1,128)}', space=vmem, size = 0x9000, scoped, tag = 'internal scratch']
  %s0 = inlined_call_operand.vmem [shape: bf16[8,32], index: 0, kind: input, shape index: {}]
  %s1 = inlined_call_operand.hbm [shape: bf16[32,64], index: 1, kind: input, shape index: {}]
  %s2 = inlined_call_operand.vmem [shape: f32[1,64], index: 2, kind: input, shape index: {}]
  %s3 = inlined_call_operand.hbm [shape: bf16[64,128], index: 3, kind: input, shape index: {}]
  %s4 = inlined_call_operand.vmem [shape: f32[1,128], index: 4, kind: input, shape index: {}]
  %s5 = inlined_call_operand.vmem [shape: bf16[8,128], index: 5, kind: output, shape index: {}]
  %s6 = sld [smem:[#allocation0]]
  $region38: #{mlp_head.1} parent=0
    _
  %s8 = ssub.s32 1, %s6
  %s9 = scalar_select 0, %s8, %s6
  $region1: #{mlp_head.1} parent=0
    #allocation2 [shape = 'u8[8192]{0}', space=vmem, size = 0x2000, scoped, tag = 'input window, operand 1, single buffered']
    #allocation3 [shape = 's32[1]{0}', space=sflag, size = 0x4, scoped, tag = 'scoped memory for mlp_head.1']
    #allocation4 [shape = 'u8[16384]{0}', space=vmem, size = 0x4000, scoped, tag = 'input window, operand 3, single buffered']
    #allocation5 [shape = 's32[1]{0}', space=sflag, size = 0x4, scoped, tag = 'scoped memory for mlp_head.1']
    %10 = vsyncpa [#allocation3], 0
    %11 = vsyncpa [#allocation5], 0
    // Predicated region
    $region2: #{mlp_head.1} parent=1 // pred_check
      _
    $region3: #{mlp_head.1} parent=1 // pred_check_branch
      %13 = sbr.rel (0) target = $region5
    $region4: #{mlp_head.1} parent=1 // pred_region
      _
    $region5: #{mlp_head.1} parent=1 // pred_fallthru
      _
    // Predicated region
    $region6: #{mlp_head.1} parent=1 // pred_check
      _
    $region7: #{mlp_head.1} parent=1 // pred_check_branch
      %15 = sbr.rel (0) target = $region9
    $region8: #{mlp_head.1} parent=1 // pred_region
      %17 = vsyncadd [#allocation3], 0
      %s18 = sshll.u32 %s1, 4
      %s19 = int_to_ptr.hbm [resolvable:$true] %s18
      %s20 = sshll.u32 [#allocation2], 4
      %s21 = int_to_ptr.vmem [resolvable:$true] %s20
      %26 = dma.hbm_to_vmem [thread:$0]  %s19, 256, %s21, [#allocation3], 64, 64, 4
    $region9: #{mlp_head.1} parent=1 // pred_fallthru
      _
    // Predicated region
    $region10: #{mlp_head.1} parent=1 // pred_check
      _
    $region11: #{mlp_head.1} parent=1 // pred_check_branch
      %28 = sbr.rel (0) target = $region13
    $region12: #{mlp_head.1} parent=1 // pred_region
      _
    $region13: #{mlp_head.1} parent=1 // pred_fallthru
      _
    // Predicated region
    $region14: #{mlp_head.1} parent=1 // pred_check
      _
    $region15: #{mlp_head.1} parent=1 // pred_check_branch
      %30 = sbr.rel (0) target = $region17
    $region16: #{mlp_head.1} parent=1 // pred_region
      %32 = vsyncadd [#allocation5], 0
      %s33 = sshll.u32 %s3, 4
      %s34 = int_to_ptr.hbm [resolvable:$true] %s33
      %s35 = sshll.u32 [#allocation4], 4
      %s36 = int_to_ptr.vmem [resolvable:$true] %s35
      %41 = dma.hbm_to_vmem [thread:$0]  %s34, 512, %s36, [#allocation5], 64, 64, 4
    $region17: #{mlp_head.1} parent=1 // pred_fallthru
      _
    // Predicated region
    $region18: #{mlp_head.1} parent=1 // pred_check
      _
    $region19: #{mlp_head.1} parent=1 // pred_check_branch
      %43 = sbr.rel (0) target = $region21
    $region20: #{mlp_head.1} parent=1 // pred_region
      _
    $region21: #{mlp_head.1} parent=1 // pred_fallthru
      _
    // Predicated region
    $region22: #{mlp_head.1} parent=1 // pred_check
      _
    $region23: #{mlp_head.1} parent=1 // pred_check_branch
      %45 = sbr.rel (0) target = $region25
    $region24: #{mlp_head.1} parent=1 // pred_region
      %47 = dma.done [#allocation3], 256
    $region25: #{mlp_head.1} parent=1 // pred_fallthru
      _
    // Predicated region
    $region26: #{mlp_head.1} parent=1 // pred_check
      _
    $region27: #{mlp_head.1} parent=1 // pred_check_branch
      %49 = sbr.rel (0) target = $region29
    $region28: #{mlp_head.1} parent=1 // pred_region
      %51 = dma.done [#allocation5], 512
    $region29: #{mlp_head.1} parent=1 // pred_fallthru
      _
    %v53 = vld [vmem:[%s0] sm:$0xf]
    %v54 = vld [vmem:[#allocation2] sm:$0xf]
    %v55 = vld [vmem:[#allocation2 + $0x4] sm:$0xf]
    %v56 = vld [vmem:[#allocation2 + $0x8] sm:$0xf]
    %v57 = vld [vmem:[#allocation2 + $0xc] sm:$0xf]
    %v58 = vld [vmem:[%s2] sm:$0x1]
    %v60 = vperm.slane %v58, 0
    %v66 = vunpack.c.l.b16 %v54
    %v67 = vunpack.c.l.b16 %v55
    %v68 = vunpack.c.l.b16 %v56
    %v69 = vunpack.c.l.b16 %v57
    %v70 = vpack.c.b16 %v67, %v66
    %v71 = vpack.c.b16 %v69, %v68
    %vm74 = vcmask 261120
    %v76 = vsel %vm74, %v53, 0
    %78 = vmatpush.bf16.msra.mxu0 0
    %79 = vmatpush.bf16.msra.mxu0 0
    %80 = vmatpush.bf16.msra.mxu0 0
    %81 = vmatpush.bf16.msra.mxu0 0
    %82 = vmatpush.bf16.msra.mxu0 0
    %83 = vmatpush.bf16.msra.mxu0 0
    %84 = vmatpush.bf16.msra.mxu0 %v71
    %85 = vmatpush.bf16.msra.mxu0 %v70
    %86 = vmatmul.bf16.gmra.mxu0 %v76
    %v87 = vpop.f32.mrf.mxu0
    %v88 = vadd.f32 %v60, %v87
    %v89 = vpop.f32.mrf.mxu0
    %90 = vdwg.mxu0
    %v91 = vmax.f32 %v88, 0.0
    %v92 = vpack.c.bf16 %v91, %v91
    %v93 = vld [vmem:[#allocation4] sm:$0xf]
    %v94 = vld [vmem:[#allocation4 + $0x4] sm:$0xf]
    %v95 = vld [vmem:[#allocation4 + $0x8] sm:$0xf]
    %v96 = vld [vmem:[#allocation4 + $0xc] sm:$0xf]
    %v97 = vld [vmem:[#allocation4 + $0x10] sm:$0xf]
    %v98 = vld [vmem:[#allocation4 + $0x14] sm:$0xf]
    %v99 = vld [vmem:[#allocation4 + $0x18] sm:$0xf]
    %v100 = vld [vmem:[#allocation4 + $0x1c] sm:$0xf]
    %v101 = vld [vmem:[%s4] sm:$0x1]
    %v103 = vperm.slane %v101, 0
    %v113 = vunpack.c.l.b16 %v93
    %v114 = vunpack.c.l.b16 %v94
    %v115 = vunpack.c.l.b16 %v95
    %v116 = vunpack.c.l.b16 %v96
    %v117 = vunpack.c.l.b16 %v97
    %v118 = vunpack.c.l.b16 %v98
    %v119 = vunpack.c.l.b16 %v99
    %v120 = vunpack.c.l.b16 %v100
    %v121 = vpack.c.b16 %v114, %v113
    %v122 = vpack.c.b16 %v116, %v115
    %v123 = vpack.c.b16 %v118, %v117
    %v124 = vpack.c.b16 %v120, %v119
    %vm129 = vcmask 523264
    %v131 = vsel %vm129, %v92, 0
    %133 = vmatpush.bf16.msra.mxu0 0
    %134 = vmatpush.bf16.msra.mxu0 0
    %135 = vmatpush.bf16.msra.mxu0 0
    %136 = vmatpush.bf16.msra.mxu0 0
    %137 = vmatpush.bf16.msra.mxu0 %v124
    %138 = vmatpush.bf16.msra.mxu0 %v123
    %139 = vmatpush.bf16.msra.mxu0 %v122
    %140 = vmatpush.bf16.msra.mxu0 %v121
    %141 = vmatmul.bf16.gmra.mxu0 %v131
    %v142 = vpop.f32.mrf.mxu0
    %v143 = vadd.f32 %v103, %v142
    %v144 = vpop.f32.mrf.mxu0
    %145 = vdwg.mxu0
    %v146 = vpack.c.bf16 %v143, %v143
    %147 = vst [vmem:[%s5] sm:$0xf] %v146
    // Predicated region
    $region30: #{mlp_head.1} parent=1 // pred_check
      _
    $region31: #{mlp_head.1} parent=1 // pred_check_branch
      %149 = sbr.rel (0) target = $region33
    $region32: #{mlp_head.1} parent=1 // pred_region
      _
    $region33: #{mlp_head.1} parent=1 // pred_fallthru
      _
    // Predicated region
    $region34: #{mlp_head.1} parent=1 // pred_check
      _
    $region35: #{mlp_head.1} parent=1 // pred_check_branch
      %151 = sbr.rel (0) target = $region37
    $region36: #{mlp_head.1} parent=1 // pred_region
      _
    $region37: #{mlp_head.1} parent=1 // pred_fallthru
      _
    %152 = vsyncpa [#allocation3], 1
    %153 = vsyncpa [#allocation5], 1

</llo_original>
